<compile_context>
chip_gen: v7x
topology: tpu7x:2x2x1
jax: 0.10.0
libtpu: 0.0.40
codegen_flags: <defaults>
</compile_context>

<pallas_src>
import jax
import jax.numpy as jnp
from jax.experimental import pallas as pl
from jax.experimental.pallas import tpu as pltpu


def _round_up(n, m):
    return ((n + m - 1) // m) * m


def time_siren_kernel(x_ref, w1_ref, w2_ref, b2_ref, o_ref):
    # x_ref : (tbp, P*input_dim)   packed rows, f32
    # w1_ref: (P*input_dim, P*emb) block-diagonal, resident in VMEM
    # w2_ref: (P*emb, P*emb)       block-diagonal, resident in VMEM
    # b2_ref: (1, P*emb)           tiled bias, resident in VMEM
    z = jnp.dot(x_ref[...], w1_ref[...], preferred_element_type=jnp.float32)
    h = jnp.sin(z)                                   # SIREN nonlinearity, f32
    y = jnp.dot(h, w2_ref[...], preferred_element_type=jnp.float32) + b2_ref[...]
    o_ref[...] = y.astype(o_ref.dtype)


def time_siren(x, w1, w2, b2, *, tile_b=16384, pack=4):
    """TimeSiren forward.

    x : (B, input_dim) f32
    w1: (emb_dim, input_dim)  PyTorch nn.Linear layout (out, in), bias-free
    w2: (emb_dim, emb_dim)    PyTorch nn.Linear layout (out, in)
    b2: (emb_dim,)
    returns (B, emb_dim) f32
    """
    B, input_dim = x.shape
    emb_dim = w1.shape[0]
    P = pack

    # ---- lane-dense repack: P rows per super-row (free row-major reshapes) ----
    row_granule = P * 8                       # packed sublane dim must be mult of 8
    padded_B = _round_up(B, row_granule)
    if padded_B != B:
        # Pads at most row_granule-1 rows; common power-of-2 batches skip this.
        x = jnp.pad(x, ((0, padded_B - B), (0, 0)))
    packed_B = padded_B // P
    xp = x.reshape(packed_B, P * input_dim)   # byte-identical reshape

    # Block-diagonal weights / tiled bias (built once per call; <=64 KiB each).
    # In production, hoist this prep out of the hot path / under jit constant folding.
    eye = jnp.eye(P, dtype=jnp.float32)
    w1_bd = jnp.kron(eye, jnp.transpose(w1))          # (P*input_dim, P*emb_dim)
    w2_bd = jnp.kron(eye, jnp.transpose(w2))          # (P*emb_dim,  P*emb_dim)
    b2_bd = jnp.tile(b2, P).reshape(1, P * emb_dim)   # (1, P*emb_dim)

    # ---- batch tile in packed rows ----
    tbp = max(8, (tile_b // P // 8) * 8)              # multiple of 8, caller-robust
    if packed_B > 8:
        # Keep >=2 grid steps so v7x dual-TC "parallel" sharding has work.
        tbp = min(tbp, _round_up(pl.cdiv(packed_B, 2), 8))
    tbp = min(tbp, packed_B)
    grid = (pl.cdiv(packed_B, tbp),)                  # ragged final block is fine

    out = pl.pallas_call(
        time_siren_kernel,
        out_shape=jax.ShapeDtypeStruct((packed_B, P * emb_dim), jnp.float32),
        grid=grid,
        in_specs=[
            pl.BlockSpec((tbp, P * input_dim), lambda i: (i, 0)),          # x: streamed
            pl.BlockSpec((P * input_dim, P * emb_dim), lambda i: (0, 0)),  # W1_bd: resident
            pl.BlockSpec((P * emb_dim, P * emb_dim), lambda i: (0, 0)),    # W2_bd: resident
            pl.BlockSpec((1, P * emb_dim), lambda i: (0, 0)),              # b2: resident
        ],
        out_specs=pl.BlockSpec((tbp, P * emb_dim), lambda i: (i, 0)),
        compiler_params=pltpu.CompilerParams(
            dimension_semantics=("parallel",),        # batch tiles are independent
            vmem_limit_bytes=32 * 1024 * 1024,        # headroom; safe on v5e/v6e/v7x
        ),
    )(xp, w1_bd, w2_bd, b2_bd)

    out = out.reshape(padded_B, emb_dim)              # free reshape back
    return out[:B] if padded_B != B else out


def _ref_time_siren(x, w1, w2, b2):
    h = jnp.sin(x @ w1.T)
    return h @ w2.T + b2[None, :]


if __name__ == "__main__":
    input_dim = 4
    emb_dim = 32
    batch = 8

    key = jax.random.PRNGKey(0)
    kx, k1, k2, kb = jax.random.split(key, 4)

    # Deterministic synthetic parameters (PyTorch Linear weight layout: (out, in)).
    x = jax.random.normal(kx, (batch, input_dim), dtype=jnp.float32)
    w1 = jax.random.normal(k1, (emb_dim, input_dim), dtype=jnp.float32) * 0.5
    w2 = jax.random.normal(k2, (emb_dim, emb_dim), dtype=jnp.float32) * 0.1
    b2 = jax.random.normal(kb, (emb_dim,), dtype=jnp.float32) * 0.1

    # Small-shape run (single grid step, batch padded to the 32-row pack granule).
    out = jax.block_until_ready(time_siren(x, w1, w2, b2))
    ref = _ref_time_siren(x, w1, w2, b2)
    assert out.shape == (batch, emb_dim)
    assert jnp.allclose(out, ref, atol=1e-4, rtol=1e-4)

    # Non-multiple-of-32 batch + small tile: exercises padding, multi-step grid
    # and a ragged final block (56 packed rows, tile of 16 -> 4 steps).
    x_big = jax.random.normal(kx, (200, input_dim), dtype=jnp.float32)
    out_big = jax.block_until_ready(time_siren(x_big, w1, w2, b2, tile_b=64))
    ref_big = _ref_time_siren(x_big, w1, w2, b2)
    assert out_big.shape == (200, emb_dim)
    assert jnp.allclose(out_big, ref_big, atol=1e-4, rtol=1e-4)

    # Power-of-2 batch with default tile: no pad/slice, 2-step parallel grid.
    x_even = jax.random.normal(k1, (256, input_dim), dtype=jnp.float32)
    out_even = jax.block_until_ready(time_siren(x_even, w1, w2, b2))
    ref_even = _ref_time_siren(x_even, w1, w2, b2)
    assert out_even.shape == (256, emb_dim)
    assert jnp.allclose(out_even, ref_even, atol=1e-4, rtol=1e-4)

    print("KERNEL_OK")
</pallas_src>

<mosaic_0001>
module attributes {stable_mosaic.version = 11 : i64} {
  func.func @time_siren_kernel(%arg0: i32, %arg1: memref<8x16xf32, #tpu.memory_space<vmem>>, %arg2: memref<16x128xf32, #tpu.memory_space<vmem>>, %arg3: memref<128x128xf32, #tpu.memory_space<vmem>>, %arg4: memref<1x128xf32, #tpu.memory_space<vmem>>, %arg5: memref<8x128xf32, #tpu.memory_space<vmem>>) attributes {dimension_semantics = [#tpu.dimension_semantics<parallel>], iteration_bounds = array<i64: 1>, scalar_prefetch = 0 : i64, scratch_operands = 0 : i64, tpu.core_type = #tpu.core_type<tc>, window_params = [{transform_indices = @transform_0, window_bounds = array<i64: 8, 16>}, {pipeline_mode = #tpu.pipeline_mode<synchronous>, transform_indices = @transform_1, window_bounds = array<i64: 16, 128>}, {pipeline_mode = #tpu.pipeline_mode<synchronous>, transform_indices = @transform_2, window_bounds = array<i64: 128, 128>}, {pipeline_mode = #tpu.pipeline_mode<synchronous>, transform_indices = @transform_3, window_bounds = array<i64: 1, 128>}, {transform_indices = @transform_4, window_bounds = array<i64: 8, 128>}]} {
    %c0 = arith.constant 0 : index
    %c0_0 = arith.constant 0 : index
    %0 = vector.load %arg1[%c0, %c0_0] : memref<8x16xf32, #tpu.memory_space<vmem>>, vector<8x16xf32>
    %c0_1 = arith.constant 0 : index
    %c0_2 = arith.constant 0 : index
    %1 = vector.load %arg2[%c0_1, %c0_2] : memref<16x128xf32, #tpu.memory_space<vmem>>, vector<16x128xf32>
    %cst = arith.constant dense<0.000000e+00> : vector<8x128xf32>
    %2 = tpu.matmul %0, %1, %cst {dimension_numbers = #tpu.dot_dimension_numbers<[1], [0], [0], [1], [0, 0, 1, 1], [], []>} : vector<8x16xf32>, vector<16x128xf32>, vector<8x128xf32> -> vector<8x128xf32>
    %3 = math.sin %2 : vector<8x128xf32>
    %c0_3 = arith.constant 0 : index
    %c0_4 = arith.constant 0 : index
    %4 = vector.load %arg3[%c0_3, %c0_4] : memref<128x128xf32, #tpu.memory_space<vmem>>, vector<128x128xf32>
    %cst_5 = arith.constant dense<0.000000e+00> : vector<8x128xf32>
    %5 = tpu.matmul %3, %4, %cst_5 {dimension_numbers = #tpu.dot_dimension_numbers<[1], [0], [0], [1], [0, 0, 1, 1], [], []>} : vector<8x128xf32>, vector<128x128xf32>, vector<8x128xf32> -> vector<8x128xf32>
    %c0_6 = arith.constant 0 : index
    %c0_7 = arith.constant 0 : index
    %6 = vector.load %arg4[%c0_6, %c0_7] : memref<1x128xf32, #tpu.memory_space<vmem>>, vector<1x128xf32>
    %7 = vector.broadcast %6 : vector<1x128xf32> to vector<8x128xf32>
    %8 = arith.addf %5, %7 : vector<8x128xf32>
    %c0_8 = arith.constant 0 : index
    %c0_9 = arith.constant 0 : index
    %9 = vector.load %arg5[%c0_8, %c0_9] : memref<8x128xf32, #tpu.memory_space<vmem>>, vector<8x128xf32>
    tpu.vector_store %arg5[%c0_8, %c0_9], %8 {strides = array<i32>} : memref<8x128xf32, #tpu.memory_space<vmem>>, vector<8x128xf32>,
    return
  }
  func.func @transform_0(%arg0: i32) -> (i32, i32) {
    %c0_i32 = arith.constant 0 : i32
    %c0_i32_0 = arith.constant 0 : i32
    return %arg0, %c0_i32 : i32, i32
  }
  func.func @transform_1(%arg0: i32) -> (i32, i32) {
    %c0_i32 = arith.constant 0 : i32
    %c0_i32_0 = arith.constant 0 : i32
    %c0_i32_1 = arith.constant 0 : i32
    return %c0_i32, %c0_i32_0 : i32, i32
  }
  func.func @transform_2(%arg0: i32) -> (i32, i32) {
    %c0_i32 = arith.constant 0 : i32
    %c0_i32_0 = arith.constant 0 : i32
    %c0_i32_1 = arith.constant 0 : i32
    return %c0_i32, %c0_i32_0 : i32, i32
  }
  func.func @transform_3(%arg0: i32) -> (i32, i32) {
    %c0_i32 = arith.constant 0 : i32
    %c0_i32_0 = arith.constant 0 : i32
    %c0_i32_1 = arith.constant 0 : i32
    return %c0_i32, %c0_i32_0 : i32, i32
  }
  func.func @transform_4(%arg0: i32) -> (i32, i32) {
    %c0_i32 = arith.constant 0 : i32
    %c0_i32_0 = arith.constant 0 : i32
    return %arg0, %c0_i32 : i32, i32
  }
}

</mosaic_0001>

<llo_original>
// kernel: tpu_custom_call.1
$region0: #{tpu_custom_call.1}
  #allocation0 [shape = 'u32[]', space=smem, size = 0x4, offset = 0x4, fixed_abs, tag = 'smem constant byte address 0x4 - core index']
  #allocation1 [shape = 'u32[144,128]{1,0:T(1,128)}', space=vmem, size = 0x12000, scoped, tag = 'internal scratch']
  %s0 = inlined_call_operand.hbm [shape: f32[8,16], index: 0, kind: input, shape index: {}]
  %s1 = inlined_call_operand.hbm [shape: f32[16,128], index: 1, kind: input, shape index: {}]
  %s2 = inlined_call_operand.hbm [shape: f32[128,128], index: 2, kind: input, shape index: {}]
  %s3 = inlined_call_operand.vmem [shape: f32[1,128], index: 3, kind: input, shape index: {}]
  %s4 = inlined_call_operand.hbm [shape: f32[8,128], index: 4, kind: output, shape index: {}]
  %s5 = sld [smem:[#allocation0]]
  $region38: #{tpu_custom_call.1} parent=0
    _
  %s7 = ssub.s32 1, %s5
  %s8 = scalar_select 0, %s7, %s5
  $region1: #{tpu_custom_call.1} parent=0
    #allocation2 [shape = 'u8[4096]{0}', space=vmem, size = 0x1000, scoped, tag = 'input window, operand 0, single buffered']
    #allocation3 [shape = 's32[1]{0}', space=sflag, size = 0x4, scoped, tag = 'scoped memory for tpu_custom_call.1']
    #allocation4 [shape = 's32[1]{0}', space=sflag, size = 0x4, scoped, tag = 'scoped memory for tpu_custom_call.1']
    #allocation5 [shape = 'u8[8192]{0}', space=vmem, size = 0x2000, scoped, tag = 'input window, operand 1, single buffered']
    #allocation6 [shape = 's32[1]{0}', space=sflag, size = 0x4, scoped, tag = 'scoped memory for tpu_custom_call.1']
    #allocation7 [shape = 'u8[65536]{0}', space=vmem, size = 0x10000, scoped, tag = 'input window, operand 2, single buffered']
    #allocation8 [shape = 'u8[4096]{0}', space=vmem, size = 0x1000, scoped, tag = 'output window, operand 0, single buffered']
    %9 = vsyncpa [#allocation3], 0
    %10 = vsyncpa [#allocation6], 0
    %11 = vsyncpa [#allocation4], 0
    // Predicated region
    $region2: #{tpu_custom_call.1} parent=1 // pred_check
      _
    $region3: #{tpu_custom_call.1} parent=1 // pred_check_branch
      %13 = sbr.rel (0) target = $region5
    $region4: #{tpu_custom_call.1} parent=1 // pred_region
      %s15 = ssub.s32 128, 128
      %16 = vsyncadd [#allocation3], %s15
      %s18 = sshll.u32 [#allocation2], 4
      %s19 = int_to_ptr.vmem [resolvable:$true] %s18
      %21 = dma.hbm_to_vmem [thread:$0]  %s0, 128, %s19, [#allocation3]
    $region5: #{tpu_custom_call.1} parent=1 // pred_fallthru
      _
    // Predicated region
    $region6: #{tpu_custom_call.1} parent=1 // pred_check
      _
    $region7: #{tpu_custom_call.1} parent=1 // pred_check_branch
      %23 = sbr.rel (0) target = $region9
    $region8: #{tpu_custom_call.1} parent=1 // pred_region
      %s25 = ssub.s32 256, 256
      %26 = vsyncadd [#allocation6], %s25
      %s27 = sshll.u32 [#allocation5], 4
      %s28 = int_to_ptr.vmem [resolvable:$true] %s27
      %33 = dma.hbm_to_vmem [thread:$0]  %s1, 256, %s28, [#allocation6], 128, 128, 8
    $region9: #{tpu_custom_call.1} parent=1 // pred_fallthru
      _
    // Predicated region
    $region10: #{tpu_custom_call.1} parent=1 // pred_check
      _
    $region11: #{tpu_custom_call.1} parent=1 // pred_check_branch
      %35 = sbr.rel (0) target = $region13
    $region12: #{tpu_custom_call.1} parent=1 // pred_region
      %s37 = ssub.s32 2048, 2048
      %38 = vsyncadd [#allocation6], %s37
      %s39 = sshll.u32 [#allocation7], 4
      %s40 = int_to_ptr.vmem [resolvable:$true] %s39
      %45 = dma.hbm_to_vmem [thread:$0]  %s2, 2048, %s40, [#allocation6], 128, 128, 8
    $region13: #{tpu_custom_call.1} parent=1 // pred_fallthru
      _
    // Predicated region
    $region14: #{tpu_custom_call.1} parent=1 // pred_check
      _
    $region15: #{tpu_custom_call.1} parent=1 // pred_check_branch
      %47 = sbr.rel (0) target = $region17
    $region16: #{tpu_custom_call.1} parent=1 // pred_region
      _
    $region17: #{tpu_custom_call.1} parent=1 // pred_fallthru
      _
    // Predicated region
    $region18: #{tpu_custom_call.1} parent=1 // pred_check
      _
    $region19: #{tpu_custom_call.1} parent=1 // pred_check_branch
      %49 = sbr.rel (0) target = $region21
    $region20: #{tpu_custom_call.1} parent=1 // pred_region
      %50 = dma.done [#allocation3], 128
    $region21: #{tpu_custom_call.1} parent=1 // pred_fallthru
      _
    // Predicated region
    $region22: #{tpu_custom_call.1} parent=1 // pred_check
      _
    $region23: #{tpu_custom_call.1} parent=1 // pred_check_branch
      %52 = sbr.rel (0) target = $region25
    $region24: #{tpu_custom_call.1} parent=1 // pred_region
      %53 = dma.done [#allocation6], 256
    $region25: #{tpu_custom_call.1} parent=1 // pred_fallthru
      _
    // Predicated region
    $region26: #{tpu_custom_call.1} parent=1 // pred_check
      _
    $region27: #{tpu_custom_call.1} parent=1 // pred_check_branch
      %55 = sbr.rel (0) target = $region29
    $region28: #{tpu_custom_call.1} parent=1 // pred_region
      %56 = dma.done [#allocation6], 2048
    $region29: #{tpu_custom_call.1} parent=1 // pred_fallthru
      _
    %v57 = vld [vmem:[#allocation2] sm:$0xff]
    %v58 = vld [vmem:[#allocation5] sm:$0xff]
    %v59 = vld [vmem:[#allocation5 + $0x8] sm:$0xff]
    %vm60 = vcmask 130048
    %v62 = vsel %vm60, %v57, 0
    %64 = vmatprep.subr.mxu0 0.0
    %65 = vmatpush1.msra.mxu0 %v58
    %66 = vmatprep.subr.mxu0 0.0
    %67 = vmatpush1.msra.mxu0 %v59
    %68 = vmatprep.subr.mxu0 0.0
    %69 = vmatpush1.msra.mxu0 0.0
    %70 = vmatprep.subr.mxu0 0.0
    %71 = vmatpush1.msra.mxu0 0.0
    %72 = vmatprep.subr.mxu0 0.0
    %73 = vmatpush1.msra.mxu0 0.0
    %74 = vmatprep.subr.mxu0 0.0
    %75 = vmatpush1.msra.mxu0 0.0
    %76 = vmatprep.subr.mxu0 0.0
    %77 = vmatpush1.msra.mxu0 0.0
    %78 = vmatprep.subr.mxu0 0.0
    %79 = vmatpush1.msra.mxu0 0.0
    %80 = vmatprep.subr.mxu0 0.0
    %81 = vmatpush1.msra.mxu0 0.0
    %82 = vmatprep.subr.mxu0 0.0
    %83 = vmatpush1.msra.mxu0 0.0
    %84 = vmatprep.subr.mxu0 0.0
    %85 = vmatpush1.msra.mxu0 0.0
    %86 = vmatprep.subr.mxu0 0.0
    %87 = vmatpush1.msra.mxu0 0.0
    %88 = vmatprep.subr.mxu0 0.0
    %89 = vmatpush1.msra.mxu0 0.0
    %90 = vmatprep.subr.mxu0 0.0
    %91 = vmatpush1.msra.mxu0 0.0
    %92 = vmatprep.subr.mxu0 0.0
    %93 = vmatpush1.msra.mxu0 0.0
    %94 = vmatprep.subr.mxu0 0.0
    %95 = vmatpush1.msra.mxu0 0.0
    %96 = vmatprep.subr.mxu0 0.0
    %97 = vmatpush1.msra.mxu0 0.0
    %98 = vmatprep.subr.mxu0 0.0
    %99 = vmatpush1.msra.mxu0 0.0
    %100 = vmatprep.subr.mxu0 0.0
    %101 = vmatpush1.msra.mxu0 0.0
    %102 = vmatprep.subr.mxu0 0.0
    %103 = vmatpush1.msra.mxu0 0.0
    %104 = vmatprep.subr.mxu0 0.0
    %105 = vmatpush1.msra.mxu0 0.0
    %106 = vmatprep.subr.mxu0 0.0
    %107 = vmatpush1.msra.mxu0 0.0
    %108 = vmatprep.subr.mxu0 0.0
    %109 = vmatpush1.msra.mxu0 0.0
    %110 = vmatprep.subr.mxu0 0.0
    %111 = vmatpush1.msra.mxu0 0.0
    %112 = vmatprep.subr.mxu0 0.0
    %113 = vmatpush1.msra.mxu0 0.0
    %114 = vmatprep.subr.mxu0 0.0
    %115 = vmatpush1.msra.mxu0 0.0
    %116 = vmatprep.subr.mxu0 0.0
    %117 = vmatpush1.msra.mxu0 0.0
    %118 = vmatprep.subr.mxu0 0.0
    %119 = vmatpush1.msra.mxu0 0.0
    %120 = vmatprep.subr.mxu0 0.0
    %121 = vmatpush1.msra.mxu0 0.0
    %122 = vmatprep.subr.mxu0 0.0
    %123 = vmatpush1.msra.mxu0 0.0
    %124 = vmatprep.subr.mxu0 0.0
    %125 = vmatpush1.msra.mxu0 0.0
    %126 = vmatprep.subr.mxu0 0.0
    %127 = vmatpush1.msra.mxu0 0.0
    %128 = vmatprep.mubr.f32.mxu0 0.0
    %129 = vmatmul.mubr.f32.gmra.mrb[0].mxu0 %v62
    %v130 = vpop.f32.mrb[0].mxu0
    %v131 = vadd.f32 0.0, %v130
    %v132 = vpop.f32.mrb[0].mxu0
    %133 = vdwg.mxu0
    %v134 = vand.u32 2147483647, %v131
    %vm135 = vcmp.le.f32.partialorder %v134, 0.7853982
    %vm136 = vcmp.lt.s32.totalorder %v131, 0
    %v137 = vand.u32 %v131, 2139095040
    %v138 = vshrl.u32 %v137, 23
    %v139 = vsub.s32 %v138, 127
    %v140 = vand.u32 2147483647, %v131
    %v141 = vand.u32 %v140, 8388607
    %v142 = vor.u32 %v141, 8388608
    %v143 = vsub.s32 0, %v142
    %v144 = vadd.s32 %v139, 1
    %vm145 = vcmp.gt.s32.totalorder %v144, 0
    %v146 = vsel %vm145, %v144, 0
    %v147 = vshrl.u32 %v146, 5
    %v148 = vand.u32 %v146, 31
    %v149 = vsub.s32 32, %v148
    %v150 = vshrl.u32 683565275, %v149
    %v151 = vshll.u32 683565275, %v148
    %v152 = vshrl.u32 2475754826, %v149
    %v153 = vor.u32 %v151, %v152
    %v154 = vshll.u32 2475754826, %v148
    %v155 = vshrl.u32 2131351028, %v149
    %v156 = vor.u32 %v154, %v155
    %v157 = vshll.u32 2131351028, %v148
    %v158 = vshrl.u32 2102212464, %v149
    %v159 = vor.u32 %v157, %v158
    %v160 = vshll.u32 2102212464, %v148
    %v161 = vshrl.u32 920167782, %v149
    %v162 = vor.u32 %v160, %v161
    %v163 = vshll.u32 920167782, %v148
    %v164 = vshrl.u32 1326507024, %v149
    %v165 = vor.u32 %v163, %v164
    %vm166 = vcmp.lt.s32.totalorder %v147, 1
    %vm167 = vcmp.lt.s32.totalorder %v147, 2
    %vm168 = vcmp.lt.s32.totalorder %v147, 3
    %vm169 = vcmp.lt.s32.totalorder %v147, 4
    %v170 = vsel %vm166, %v150, %v153
    %v171 = vsel %vm169, %v159, 2102212464
    %v172 = vsel %vm168, %v156, %v171
    %v173 = vsel %vm167, %v170, %v172
    %v174 = vsel %vm166, %v153, %v156
    %v175 = vsel %vm169, %v162, 920167782
    %v176 = vsel %vm168, %v159, %v175
    %v177 = vsel %vm167, %v174, %v176
    %v178 = vsel %vm166, %v156, %v159
    %v179 = vsel %vm169, %v165, 1326507024
    %v180 = vsel %vm168, %v162, %v179
    %v181 = vsel %vm167, %v178, %v180
    %v182 = vshll.u32 %v142, 8
    %v183 = vmul.u32.u64.compose %v182, %v181
    %v184 = vextract.low.u32 %v183
    %v185 = vextract.high.u32 %v183
    %v186 = vmul.u32.u64.compose %v182, %v177
    %v187 = vextract.low.u32 %v186
    %v188 = vextract.high.u32 %v186
    %v189 = vmul.u32 %v182, %v173
    %v190 = vadd.s32 %v185, %v187
    %vm191 = vc.u32 %v185, %v187
    %v192 = vadd.s32 %v188, 1
    %v193 = vsel %vm191, %v192, %v188
    %v194 = vadd.s32 %v189, %v193
    %v195 = vadd.s32 %v194, 536870912
    %v196 = vshrl.u32 %v195, 30
    %v197 = vshll.u32 %v196, 30
    %v198 = vsub.s32 %v194, %v197
    %vm199 = vcmp.lt.s32.totalorder %v198, 0
    %v200 = vsub.s32 0, %v198
    %v201 = vsel %vm199, %v200, %v198
    %v202 = vclz %v201
    %v203 = vsub.s32 %v202, 2
    %vm204 = vcmp.gt.s32.totalorder 0, %v203
    %v205 = vsel %vm204, 0, %v203
    %v206 = vsub.s32 32, %v205
    %v207 = vshll.u32 %v198, %v205
    %v208 = vshrl.u32 %v190, %v206
    %v209 = vor.u32 %v207, %v208
    %v210 = vsub.s32 4294967266, %v205
    %v211 = vadd.s32 %v210, 127
    %v212 = vshll.u32 %v211, 23
    %v213 = vor.u32 4788187, %v212
    %v214 = vand.u32 2147483647, %v213
    %v216 = vcvt.s32.f32 %v209
    %v217 = vmul.f32 %v216, %v214
    %v218 = vxor.u32 %v217, 2147483648
    %v219 = vsel %vm136, %v218, %v217
    %v220 = vsub.s32 4, %v196
    %v221 = vsel %vm136, %v220, %v196
    %v222 = vsel %vm135, %v131, %v219
    %v223 = vsel %vm135, 0, %v221
    %v224 = vcosq.f32.pop %v222
    %v225 = vsinq.f32.pop %v222
    %vm226 = vweird.f32 %v131
    %v227 = vadd.s32 %v223, 3
    %v228 = vand.u32 %v227, 3
    %vm229 = vcmp.lt.s32.totalorder %v228, 2
    %vm230 = vcmp.eq.s32.totalorder %v228, 0
    %v231 = vxor.u32 %v225, 2147483648
    %v232 = vsel %vm230, %v224, %v231
    %vm233 = vcmp.eq.s32.totalorder %v228, 2
    %v234 = vxor.u32 %v224, 2147483648
    %v235 = vsel %vm233, %v234, %v225
    %v236 = vsel %vm229, %v232, %v235
    %v237 = vsel %vm226, nan, %v236
    %v238 = vld [vmem:[#allocation7] sm:$0xff]
    %v239 = vld [vmem:[#allocation7 + $0x8] sm:$0xff]
    %v240 = vld [vmem:[#allocation7 + $0x10] sm:$0xff]
    %v241 = vld [vmem:[#allocation7 + $0x18] sm:$0xff]
    %v242 = vld [vmem:[#allocation7 + $0x20] sm:$0xff]
    %v243 = vld [vmem:[#allocation7 + $0x28] sm:$0xff]
    %v244 = vld [vmem:[#allocation7 + $0x30] sm:$0xff]
    %v245 = vld [vmem:[#allocation7 + $0x38] sm:$0xff]
    %v246 = vld [vmem:[#allocation7 + $0x40] sm:$0xff]
    %v247 = vld [vmem:[#allocation7 + $0x48] sm:$0xff]
    %v248 = vld [vmem:[#allocation7 + $0x50] sm:$0xff]
    %v249 = vld [vmem:[#allocation7 + $0x58] sm:$0xff]
    %v250 = vld [vmem:[#allocation7 + $0x60] sm:$0xff]
    %v251 = vld [vmem:[#allocation7 + $0x68] sm:$0xff]
    %v252 = vld [vmem:[#allocation7 + $0x70] sm:$0xff]
    %v253 = vld [vmem:[#allocation7 + $0x78] sm:$0xff]
    %v254 = vld [vmem:[%s3] sm:$0x1]
    %v256 = vlaneseq
    %v257 = vshrl.u32 %v256, 7
    %v258 = vsub.s32 0, %v257
    %v259 = vrot.slane %v254, %v258
    %261 = vmatprep.subr.mxu0 0.0
    %262 = vmatpush1.msra.mxu0 %v238
    %263 = vmatprep.subr.mxu0 0.0
    %264 = vmatpush1.msra.mxu0 %v239
    %265 = vmatprep.subr.mxu0 0.0
    %266 = vmatpush1.msra.mxu0 %v240
    %267 = vmatprep.subr.mxu0 0.0
    %268 = vmatpush1.msra.mxu0 %v241
    %269 = vmatprep.subr.mxu0 0.0
    %270 = vmatpush1.msra.mxu0 %v242
    %271 = vmatprep.subr.mxu0 0.0
    %272 = vmatpush1.msra.mxu0 %v243
    %273 = vmatprep.subr.mxu0 0.0
    %274 = vmatpush1.msra.mxu0 %v244
    %275 = vmatprep.subr.mxu0 0.0
    %276 = vmatpush1.msra.mxu0 %v245
    %277 = vmatprep.subr.mxu0 0.0
    %278 = vmatpush1.msra.mxu0 %v246
    %279 = vmatprep.subr.mxu0 0.0
    %280 = vmatpush1.msra.mxu0 %v247
    %281 = vmatprep.subr.mxu0 0.0
    %282 = vmatpush1.msra.mxu0 %v248
    %283 = vmatprep.subr.mxu0 0.0
    %284 = vmatpush1.msra.mxu0 %v249
    %285 = vmatprep.subr.mxu0 0.0
    %286 = vmatpush1.msra.mxu0 %v250
    %287 = vmatprep.subr.mxu0 0.0
    %288 = vmatpush1.msra.mxu0 %v251
    %289 = vmatprep.subr.mxu0 0.0
    %290 = vmatpush1.msra.mxu0 %v252
    %291 = vmatprep.subr.mxu0 0.0
    %292 = vmatpush1.msra.mxu0 %v253
    %293 = vmatprep.subr.mxu0 0.0
    %294 = vmatpush1.msra.mxu0 0.0
    %295 = vmatprep.subr.mxu0 0.0
    %296 = vmatpush1.msra.mxu0 0.0
    %297 = vmatprep.subr.mxu0 0.0
    %298 = vmatpush1.msra.mxu0 0.0
    %299 = vmatprep.subr.mxu0 0.0
    %300 = vmatpush1.msra.mxu0 0.0
    %301 = vmatprep.subr.mxu0 0.0
    %302 = vmatpush1.msra.mxu0 0.0
    %303 = vmatprep.subr.mxu0 0.0
    %304 = vmatpush1.msra.mxu0 0.0
    %305 = vmatprep.subr.mxu0 0.0
    %306 = vmatpush1.msra.mxu0 0.0
    %307 = vmatprep.subr.mxu0 0.0
    %308 = vmatpush1.msra.mxu0 0.0
    %309 = vmatprep.subr.mxu0 0.0
    %310 = vmatpush1.msra.mxu0 0.0
    %311 = vmatprep.subr.mxu0 0.0
    %312 = vmatpush1.msra.mxu0 0.0
    %313 = vmatprep.subr.mxu0 0.0
    %314 = vmatpush1.msra.mxu0 0.0
    %315 = vmatprep.subr.mxu0 0.0
    %316 = vmatpush1.msra.mxu0 0.0
    %317 = vmatprep.subr.mxu0 0.0
    %318 = vmatpush1.msra.mxu0 0.0
    %319 = vmatprep.subr.mxu0 0.0
    %320 = vmatpush1.msra.mxu0 0.0
    %321 = vmatprep.subr.mxu0 0.0
    %322 = vmatpush1.msra.mxu0 0.0
    %323 = vmatprep.subr.mxu0 0.0
    %324 = vmatpush1.msra.mxu0 0.0
    %325 = vmatprep.mubr.f32.mxu0 0.0
    %326 = vmatmul.mubr.f32.gmra.mrb[0].mxu0 %v237
    %v327 = vpop.f32.mrb[0].mxu0
    %v328 = vadd.f32 %v259, %v327
    %v329 = vpop.f32.mrb[0].mxu0
    %330 = vdwg.mxu0
    %331 = vst [vmem:[#allocation8] sm:$0xff] %v328
    // Predicated region
    $region30: #{tpu_custom_call.1} parent=1 // pred_check
      _
    $region31: #{tpu_custom_call.1} parent=1 // pred_check_branch
      %333 = sbr.rel (0) target = $region33
    $region32: #{tpu_custom_call.1} parent=1 // pred_region
      %s335 = ssub.s32 128, 128
      %336 = vsyncadd [#allocation4], %s335
      %s338 = sshll.u32 [#allocation8], 4
      %s339 = int_to_ptr.vmem [resolvable:$true] %s338
      %341 = dma.vmem_to_hbm [thread:$0]  %s339, 128, %s4, [#allocation4]
    $region33: #{tpu_custom_call.1} parent=1 // pred_fallthru
      _
    // Predicated region
    $region34: #{tpu_custom_call.1} parent=1 // pred_check
      _
    $region35: #{tpu_custom_call.1} parent=1 // pred_check_branch
      %343 = sbr.rel (0) target = $region37
    $region36: #{tpu_custom_call.1} parent=1 // pred_region
      %344 = dma.done [#allocation4], 128
    $region37: #{tpu_custom_call.1} parent=1 // pred_fallthru
      _
    %345 = vsyncpa [#allocation3], 1
    %346 = vsyncpa [#allocation6], 1
    %347 = vsyncpa [#allocation4], 1

</llo_original>
